<compile_context>
chip_gen: v7x
topology: tpu7x:2x2x1
jax: 0.10.0
libtpu: 0.0.40
codegen_flags: <defaults>
</compile_context>

<pallas_src>
import jax
import jax.numpy as jnp
from jax.experimental import pallas as pl
from jax.experimental.pallas import tpu as pltpu


def _make_pos_encoding(max_len: int, embedding_dims: int) -> jnp.ndarray:
    """Deterministic sinusoidal table, identical to the PyTorch __init__."""
    positions = jnp.arange(0, max_len, dtype=jnp.float32)[:, None]      # (L, 1)
    dims = jnp.arange(0, embedding_dims, 2, dtype=jnp.float32)          # (D/2,)
    inv_freq = 1.0 / (10000.0 ** (dims / float(embedding_dims)))        # (D/2,)
    angles = positions * inv_freq                                       # (L, D/2)
    pos = jnp.zeros((max_len, embedding_dims), dtype=jnp.float32)
    pos = pos.at[:, 0::2].set(jnp.sin(angles))
    pos = pos.at[:, 1::2].set(jnp.cos(angles))
    return pos                                                          # (L, D)


def _pos_enc_kernel(x_ref, pos_ref, o_ref):
    # x_ref / o_ref: (tile_b, tile_rows, lanes); pos_ref: (tile_rows, lanes).
    # Trailing-dim broadcast of pos over the batch-tile dim; single VPU add per vreg.
    o_ref[...] = x_ref[...] + pos_ref[...]


def _fold_lane_dense(tokens: int, dim: int) -> tuple[int, int]:
    """Fold (tokens, dim) -> (rows, lanes) with lanes a multiple of 128 when possible."""
    if dim % 128 == 0:
        return tokens, dim
    total = tokens * dim
    if total % 128 == 0:
        return total // 128, 128
    # Fallback: keep original layout (masked stores, still correct).
    return tokens, dim


# ~2 MiB per (single) buffer keeps the double-buffered working set (~12 MiB worst case)
# under every generation's default scoped-VMEM limit, and is well past the DMA
# bandwidth knee for streaming adds.
_BUDGET_BYTES = 2 * 1024 * 1024


def _choose_tiles(
    batch: int,
    rows: int,
    lanes: int,
    itemsize: int,
    row_tile_override: int | None,
) -> tuple[int, int]:
    """Pick (tile_b, tile_rows): biggest tiles under the per-buffer VMEM budget."""
    # --- row (token) tile ---
    if row_tile_override is not None:
        tile_rows = row_tile_override
    elif rows % 8 != 0:
        tile_rows = rows  # must use full axis (block dim == full array dim is allowed)
    else:
        max_rows = max(8, _BUDGET_BYTES // max(1, lanes * itemsize))
        if rows <= max_rows:
            tile_rows = rows
        else:
            tile_rows = 8
            t = 16
            while t <= max_rows:
                if rows % t == 0:
                    tile_rows = t
                t += 8
    # --- batch tile (only fuse batches when a full per-batch slab fits in one block) ---
    if tile_rows == rows:
        per_batch = rows * lanes * itemsize
        max_b = max(1, _BUDGET_BYTES // max(1, per_batch))
        tile_b = 1
        for cand in range(1, batch + 1):
            if batch % cand == 0 and cand <= max_b:
                tile_b = cand
    else:
        tile_b = 1
    return tile_b, tile_rows


def positional_encoding_forward(
    x: jnp.ndarray,
    pos_encoding: jnp.ndarray,
    row_tile_override: int | None = None,
) -> jnp.ndarray:
    """x: [B, T, D]; pos_encoding: [max_len, D] -> x + pos_encoding[:T]."""
    batch, tokens, dim = x.shape
    max_len = pos_encoding.shape[0]
    if tokens > max_len:
        raise ValueError(f"tokens ({tokens}) exceeds max_len ({max_len})")

    # Glue: slice + dtype-match the table (avoids a mixed-dtype add in the kernel and
    # halves pos HBM traffic when x is bf16).
    pos_slice = pos_encoding[:tokens, :].astype(x.dtype)

    # Lane-dense layout (free contiguous reshape in the wrapper; broadcast over batch
    # is preserved because the fold is per-batch-element contiguous).
    rows, lanes = _fold_lane_dense(tokens, dim)
    x2 = x.reshape(batch, rows, lanes)
    pos2 = pos_slice.reshape(rows, lanes)

    itemsize = jnp.dtype(x.dtype).itemsize
    tile_b, tile_rows = _choose_tiles(batch, rows, lanes, itemsize, row_tile_override)
    assert rows % tile_rows == 0 and batch % tile_b == 0
    num_row_tiles = rows // tile_rows
    num_batch_tiles = batch // tile_b

    cost = pl.CostEstimate(
        flops=batch * rows * lanes,
        transcendentals=0,
        bytes_accessed=(2 * batch * rows * lanes + rows * lanes) * itemsize,
    )

    out = pl.pallas_call(
        _pos_enc_kernel,
        out_shape=jax.ShapeDtypeStruct((batch, rows, lanes), x.dtype),
        grid_spec=pltpu.PrefetchScalarGridSpec(
            num_scalar_prefetch=0,
            # Row-tile axis OUTER, batch-tile INNER: pos block index only depends on
            # the row tile, so its DMA is skipped across the inner batch loop.
            grid=(num_row_tiles, num_batch_tiles),
            in_specs=[
                pl.BlockSpec((tile_b, tile_rows, lanes), lambda t, b: (b, t, 0)),
                pl.BlockSpec((tile_rows, lanes), lambda t, b: (t, 0)),
            ],
            out_specs=pl.BlockSpec((tile_b, tile_rows, lanes), lambda t, b: (b, t, 0)),
        ),
        compiler_params=pltpu.CompilerParams(
            # Both axes are independent -> shard across both TensorCores on v7x.
            dimension_semantics=("parallel", "parallel"),
        ),
        cost_estimate=cost,
    )(x2, pos2)

    return out.reshape(batch, tokens, dim)


if __name__ == "__main__":
    max_len = 512
    key = jax.random.PRNGKey(0)

    # Case 1: small shapes matching the module's forward. D < 128 exercises the
    # lane-dense fold path ((8, 32) -> (2, 128)) and the fused-batch block path
    # (tile_b == batch, single grid step).
    batch, tokens, dim = 2, 8, 32
    k1, k2 = jax.random.split(key)
    x = jax.random.normal(k1, (batch, tokens, dim), dtype=jnp.float32)
    pos_encoding = _make_pos_encoding(max_len, dim)
    out = jax.block_until_ready(positional_encoding_forward(x, pos_encoding))
    ref = x + pos_encoding[None, :tokens, :]
    assert out.shape == (batch, tokens, dim)
    assert jnp.allclose(out, ref, atol=1e-6), "mismatch vs reference (case 1)"

    # Case 2: D a multiple of 128 (no fold) with a forced multi-row-tile grid to
    # exercise the (row_tiles, batch) tiling + pos-DMA-reuse path.
    batch2, tokens2, dim2 = 2, 16, 128
    x_b = jax.random.normal(k2, (batch2, tokens2, dim2), dtype=jnp.float32)
    pos_encoding2 = _make_pos_encoding(max_len, dim2)
    out2 = jax.block_until_ready(
        positional_encoding_forward(x_b, pos_encoding2, row_tile_override=8)
    )
    ref2 = x_b + pos_encoding2[None, :tokens2, :]
    assert jnp.allclose(out2, ref2, atol=1e-6), "mismatch vs reference (case 2)"

    print("KERNEL_OK")
</pallas_src>

<mosaic_0001>
module attributes {stable_mosaic.version = 11 : i64} {
  func.func @_pos_enc_kernel(%arg0: i32, %arg1: i32, %arg2: memref<2x2x128xf32, #tpu.memory_space<vmem>>, %arg3: memref<2x128xf32, #tpu.memory_space<vmem>>, %arg4: memref<2x2x128xf32, #tpu.memory_space<vmem>>) attributes {dimension_semantics = [#tpu.dimension_semantics<parallel>, #tpu.dimension_semantics<parallel>], iteration_bounds = array<i64: 1, 1>, scalar_prefetch = 0 : i64, scratch_operands = 0 : i64, tpu.core_type = #tpu.core_type<tc>, window_params = [{transform_indices = @transform_0, window_bounds = array<i64: 2, 2, 128>}, {transform_indices = @transform_1, window_bounds = array<i64: 2, 128>}, {transform_indices = @transform_2, window_bounds = array<i64: 2, 2, 128>}]} {
    %c0 = arith.constant 0 : index
    %c0_0 = arith.constant 0 : index
    %c0_1 = arith.constant 0 : index
    %0 = vector.load %arg2[%c0, %c0_0, %c0_1] : memref<2x2x128xf32, #tpu.memory_space<vmem>>, vector<2x2x128xf32>
    %c0_2 = arith.constant 0 : index
    %c0_3 = arith.constant 0 : index
    %1 = vector.load %arg3[%c0_2, %c0_3] : memref<2x128xf32, #tpu.memory_space<vmem>>, vector<2x128xf32>
    %2 = vector.shape_cast %1 : vector<2x128xf32> to vector<1x2x128xf32>
    %3 = vector.broadcast %2 : vector<1x2x128xf32> to vector<2x2x128xf32>
    %4 = arith.addf %0, %3 : vector<2x2x128xf32>
    %c0_4 = arith.constant 0 : index
    %c0_5 = arith.constant 0 : index
    %c0_6 = arith.constant 0 : index
    %5 = vector.load %arg4[%c0_4, %c0_5, %c0_6] : memref<2x2x128xf32, #tpu.memory_space<vmem>>, vector<2x2x128xf32>
    tpu.vector_store %arg4[%c0_4, %c0_5, %c0_6], %4 {strides = array<i32>} : memref<2x2x128xf32, #tpu.memory_space<vmem>>, vector<2x2x128xf32>,
    return
  }
  func.func @transform_0(%arg0: i32, %arg1: i32) -> (i32, i32, i32) {
    %c0_i32 = arith.constant 0 : i32
    %c0_i32_0 = arith.constant 0 : i32
    return %arg1, %arg0, %c0_i32 : i32, i32, i32
  }
  func.func @transform_1(%arg0: i32, %arg1: i32) -> (i32, i32) {
    %c0_i32 = arith.constant 0 : i32
    %c0_i32_0 = arith.constant 0 : i32
    return %arg0, %c0_i32 : i32, i32
  }
  func.func @transform_2(%arg0: i32, %arg1: i32) -> (i32, i32, i32) {
    %c0_i32 = arith.constant 0 : i32
    %c0_i32_0 = arith.constant 0 : i32
    return %arg1, %arg0, %c0_i32 : i32, i32, i32
  }
}

</mosaic_0001>

<llo_original>
// kernel: tpu_custom_call.1
$region0: #{tpu_custom_call.1}
  #allocation0 [shape = 'u32[]', space=smem, size = 0x4, offset = 0x4, fixed_abs, tag = 'smem constant byte address 0x4 - core index']
  #allocation1 [shape = 'u32[144,128]{1,0:T(1,128)}', space=vmem, size = 0x12000, scoped, tag = 'internal scratch']
  %s0 = inlined_call_operand.hbm [shape: f32[2,2,128], index: 0, kind: input, shape index: {}]
  %s1 = inlined_call_operand.vmem [shape: f32[2,128], index: 1, kind: input, shape index: {}]
  %s2 = inlined_call_operand.hbm [shape: f32[2,2,128], index: 2, kind: output, shape index: {}]
  %s3 = sld [smem:[#allocation0]]
  $region22: #{tpu_custom_call.1} parent=0
    _
  %s5 = ssub.s32 1, %s3
  %s6 = scalar_select 0, %s5, %s3
  $region1: #{tpu_custom_call.1} parent=0
    #allocation2 [shape = 'u8[2048]{0}', space=vmem, size = 0x800, scoped, tag = 'input window, operand 0, single buffered']
    #allocation3 [shape = 's32[1]{0}', space=sflag, size = 0x4, scoped, tag = 'scoped memory for tpu_custom_call.1']
    #allocation4 [shape = 's32[1]{0}', space=sflag, size = 0x4, scoped, tag = 'scoped memory for tpu_custom_call.1']
    #allocation5 [shape = 'u8[2048]{0}', space=vmem, size = 0x800, scoped, tag = 'output window, operand 0, single buffered']
    %7 = vsyncpa [#allocation3], 0
    %8 = vsyncpa [#allocation4], 0
    // Predicated region
    $region2: #{tpu_custom_call.1} parent=1 // pred_check
      _
    $region3: #{tpu_custom_call.1} parent=1 // pred_check_branch
      %10 = sbr.rel (0) target = $region5
    $region4: #{tpu_custom_call.1} parent=1 // pred_region
      %s12 = ssub.s32 64, 64
      %13 = vsyncadd [#allocation3], %s12
      %s14 = sshll.u32 [#allocation2], 4
      %s15 = int_to_ptr.vmem [resolvable:$true] %s14
      %20 = dma.hbm_to_vmem [thread:$0]  %s0, 64, %s15, [#allocation3], 32, 32, 2
    $region5: #{tpu_custom_call.1} parent=1 // pred_fallthru
      _
    // Predicated region
    $region6: #{tpu_custom_call.1} parent=1 // pred_check
      _
    $region7: #{tpu_custom_call.1} parent=1 // pred_check_branch
      %22 = sbr.rel (0) target = $region9
    $region8: #{tpu_custom_call.1} parent=1 // pred_region
      _
    $region9: #{tpu_custom_call.1} parent=1 // pred_fallthru
      _
    // Predicated region
    $region10: #{tpu_custom_call.1} parent=1 // pred_check
      _
    $region11: #{tpu_custom_call.1} parent=1 // pred_check_branch
      %24 = sbr.rel (0) target = $region13
    $region12: #{tpu_custom_call.1} parent=1 // pred_region
      %25 = dma.done [#allocation3], 64
    $region13: #{tpu_custom_call.1} parent=1 // pred_fallthru
      _
    %v26 = vld [vmem:[#allocation2] sm:$0x3]
    %v27 = vld [vmem:[#allocation2 + $0x2] sm:$0x3]
    %v28 = vld [vmem:[%s1] sm:$0x3]
    %v29 = vadd.f32 %v26, %v28
    %v30 = vadd.f32 %v27, %v28
    %31 = vst [vmem:[#allocation5] sm:$0x3] %v29
    %32 = vst [vmem:[#allocation5 + $0x2] sm:$0x3] %v30
    // Predicated region
    $region14: #{tpu_custom_call.1} parent=1 // pred_check
      _
    $region15: #{tpu_custom_call.1} parent=1 // pred_check_branch
      %34 = sbr.rel (0) target = $region17
    $region16: #{tpu_custom_call.1} parent=1 // pred_region
      %s36 = ssub.s32 64, 64
      %37 = vsyncadd [#allocation4], %s36
      %s38 = sshll.u32 [#allocation5], 4
      %s39 = int_to_ptr.vmem [resolvable:$true] %s38
      %44 = dma.vmem_to_hbm [thread:$0]  %s39, 64, %s2, [#allocation4], 32, 32, 2
    $region17: #{tpu_custom_call.1} parent=1 // pred_fallthru
      _
    // Predicated region
    $region18: #{tpu_custom_call.1} parent=1 // pred_check
      _
    $region19: #{tpu_custom_call.1} parent=1 // pred_check_branch
      %46 = sbr.rel (0) target = $region21
    $region20: #{tpu_custom_call.1} parent=1 // pred_region
      %47 = dma.done [#allocation4], 64
    $region21: #{tpu_custom_call.1} parent=1 // pred_fallthru
      _
    %48 = vsyncpa [#allocation3], 1
    %49 = vsyncpa [#allocation4], 1

</llo_original>
